<compile_context>
chip_gen: v6e
topology: v6e:2x2x1
jax: 0.10.0
libtpu: 0.0.40
codegen_flags: <defaults>
</compile_context>

<pallas_src>
import functools

import jax
import jax.numpy as jnp
from jax.experimental import pallas as pl
from jax.experimental.pallas import tpu as pltpu


def _mbr_score_kernel(hyp_t_ref, w1_t_ref, b1_t_ref, wout_t_ref, bout_t_ref,
                      out_ref):
    """Scores one lane-tile of hypotheses against the (folded-in) source.

    Pairs-on-lanes layout: the hypothesis/pair index lives on the lane (last)
    dimension of every operand, so both matmuls are plain (M,K)x(K,N).

    hyp_t_ref  : (D, TILE)   embedded hypotheses, transposed
    w1_t_ref   : (H, D)      hidden weight (hypothesis half), pre-transposed
    b1_t_ref   : (H, 1)      effective hidden bias (source half pre-folded)
    wout_t_ref : (2, H)      [loc ; scale] head weights, transposed
    bout_t_ref : (2, 1)      head bias, transposed
    out_ref    : (2, TILE)   row 0 = loc, row 1 = scale (lane-dense over pairs)
    """
    # Hidden layer (MXU) + ReLU.  Source contribution already lives in b1_eff.
    h_t = jnp.dot(w1_t_ref[...], hyp_t_ref[...],
                  preferred_element_type=jnp.float32)            # (H, TILE)
    h_t = jnp.maximum(h_t + b1_t_ref[...], 0.0)

    # Output heads, already in pairs-on-lanes form: (2,H) x (H,TILE) -> (2,TILE).
    out_t = jnp.dot(wout_t_ref[...], h_t,
                    preferred_element_type=jnp.float32) + bout_t_ref[...]

    # Row 0 -> loc (identity), row 1 -> scale (softplus, positive).
    # softplus over both rows then select: EUP has ample slack at this size.
    row = jax.lax.broadcasted_iota(jnp.int32, out_t.shape, 0)
    out_ref[...] = jnp.where(row == 0, out_t, jax.nn.softplus(out_t))


def _pick_tile(n_pad, max_tile):
    """Pick a 128-multiple lane tile that divides n_pad (n_pad % 128 == 0).

    Keeps >=2 grid steps when N allows (so v7x's second TensorCore gets work)
    and never exceeds max_tile -- no silent fallback that could blow VMEM.
    """
    cap = min(max_tile, n_pad)
    if n_pad >= 256:
        cap = min(cap, n_pad // 2)
    cap = max(128, (cap // 128) * 128)
    t = cap
    while t >= 128:
        if n_pad % t == 0:
            return t
        t -= 128
    return 128  # unreachable in practice: 128 always divides n_pad


@functools.partial(jax.jit, static_argnames=("max_tile",))
def mbr_get_scores_and_best(source_emb, hyp_embs, params, *, max_tile=2048):
    """Pallas analogue of BaseMBRModel.get_scores + argmax of get_best.

    source_emb : (D,)     embedded source sentence
    hyp_embs   : (N, D)   embedded hypotheses
    Returns (loc[N], scale[N], best_index[int32 scalar]).
    """
    n, d = hyp_embs.shape
    w1, b1, wout, bout = params
    h_dim = w1.shape[1]

    # --- Parameter prep (tiny; fused into the single jitted program). ------
    # Glue (BaseMBRModel.get_best): sources = [source] * len(hypotheses).
    # Fold the constant source half into the bias:
    #   concat(src, hyp) @ w1 + b1 == hyp @ w1[d:] + (b1 + src @ w1[:d]).
    w1_f = w1.astype(jnp.float32)
    b1_eff_t = (b1.astype(jnp.float32)
                + source_emb.astype(jnp.float32)[None, :] @ w1_f[:d]).T  # (H,1)
    w1_hyp_t = w1_f[d:].T                                                # (H,D)
    wout_t = wout.astype(jnp.float32).T                                  # (2,H)
    bout_t = bout.astype(jnp.float32).T                                  # (2,1)

    # Pairs-on-lanes: hypotheses as (D, N); keep the input dtype (bf16 stays
    # bf16 -> halves the only N-scaling HBM read; MXU accumulates in f32).
    hyp_t = hyp_embs.T                                                   # (D,N)

    # Pad N to a multiple of 128: lane-dense unmasked output stores and no
    # tile-divisibility edge cases.  Pad rows are sliced off below.
    n_pad = ((n + 127) // 128) * 128
    if n_pad != n:
        hyp_t = jnp.pad(hyp_t, ((0, 0), (0, n_pad - n)))

    tile = _pick_tile(n_pad, max_tile)
    grid = (n_pad // tile,)

    # VMEM: a (D, tile) f32 tile at tile<=2048, D=32 is 256 KiB (512 KiB
    # double-buffered) -- far below even v7x's 64 MiB scoped budget.
    # TODO(synk): if many sources share one hypothesis set (typical MBR), add
    # a source grid axis and keep hyp @ w1[d:] resident to amortize the matmul.
    scores = pl.pallas_call(
        _mbr_score_kernel,
        out_shape=jax.ShapeDtypeStruct((2, n_pad), jnp.float32),
        grid_spec=pltpu.PrefetchScalarGridSpec(
            num_scalar_prefetch=0,
            grid=grid,
            in_specs=[
                pl.BlockSpec((d, tile), lambda i: (0, i)),
                pl.BlockSpec((h_dim, d), lambda i: (0, 0)),
                pl.BlockSpec((h_dim, 1), lambda i: (0, 0)),
                pl.BlockSpec((2, h_dim), lambda i: (0, 0)),
                pl.BlockSpec((2, 1), lambda i: (0, 0)),
            ],
            out_specs=pl.BlockSpec((2, tile), lambda i: (0, i)),
        ),
        compiler_params=pltpu.CompilerParams(
            dimension_semantics=("parallel",)),  # no carry -> shard over TCs
    )(hyp_t, w1_hyp_t, b1_eff_t, wout_t, bout_t)

    loc = scores[0, :n]
    scale = scores[1, :n]
    # Argmax hoisted out of the kernel (negligible cost over N floats).
    best_idx = jnp.argmax(loc).astype(jnp.int32)
    return loc, scale, best_idx


def init_predictive_params(key, d, h):
    """Deterministic synthetic predictive-model parameters."""
    k1, k2, k3, k4 = jax.random.split(key, 4)
    w1 = jax.random.normal(k1, (2 * d, h), jnp.float32) * 0.1
    b1 = jax.random.normal(k2, (1, h), jnp.float32) * 0.01
    wout = jax.random.normal(k3, (h, 2), jnp.float32) * 0.1
    bout = jax.random.normal(k4, (1, 2), jnp.float32) * 0.01
    return (w1, b1, wout, bout)


def _reference(source_emb, hyp_embs, params):
    """Pure-JAX reference of the original (concat-based) forward semantics."""
    w1, b1, wout, bout = params
    n, d = hyp_embs.shape
    feat = jnp.concatenate(
        [jnp.broadcast_to(source_emb[None, :], (n, d)), hyp_embs], axis=-1)
    hdn = jnp.maximum(feat @ w1 + b1, 0.0)
    out = hdn @ wout + bout
    loc = out[:, 0]
    scale = jax.nn.softplus(out[:, 1])
    return loc, scale, jnp.argmax(loc).astype(jnp.int32)


if __name__ == "__main__":
    # TODO(synk): NMT hypothesis sampling (batch_sample) and tokenization have
    # no numeric/Pallas equivalent; hypotheses are provided as embeddings.
    D = 32          # embedding dim per sentence
    H = 64          # hidden dim of synthetic predictive model
    N = 64          # n_samples_per_source (kept small)

    key = jax.random.PRNGKey(0)
    k_src, k_hyp, k_par = jax.random.split(key, 3)
    source_emb = jax.random.normal(k_src, (D,), jnp.float32)
    hyp_embs = jax.random.normal(k_hyp, (N, D), jnp.float32)
    params = init_predictive_params(k_par, D, H)

    loc, scale, best_idx = mbr_get_scores_and_best(source_emb, hyp_embs, params)
    jax.block_until_ready((loc, scale, best_idx))

    # "get_best": return the argmax-scoring hypothesis.
    best_hypothesis = hyp_embs[best_idx]
    jax.block_until_ready(best_hypothesis)

    # Silent correctness check against the pure-JAX reference.
    ref_loc, ref_scale, ref_idx = _reference(source_emb, hyp_embs, params)
    assert jnp.allclose(loc, ref_loc, atol=2e-5, rtol=2e-5)
    assert jnp.allclose(scale, ref_scale, atol=2e-5, rtol=2e-5)
    assert int(best_idx) == int(ref_idx)

    print("KERNEL_OK")
</pallas_src>

<mosaic_0001>
module attributes {stable_mosaic.version = 11 : i64} {
  func.func @_mbr_score_kernel(%arg0: i32, %arg1: memref<32x128xf32, #tpu.memory_space<vmem>>, %arg2: memref<64x32xf32, #tpu.memory_space<vmem>>, %arg3: memref<64x1xf32, #tpu.memory_space<vmem>>, %arg4: memref<2x64xf32, #tpu.memory_space<vmem>>, %arg5: memref<2x1xf32, #tpu.memory_space<vmem>>, %arg6: memref<2x128xf32, #tpu.memory_space<vmem>>) attributes {dimension_semantics = [#tpu.dimension_semantics<parallel>], iteration_bounds = array<i64: 1>, scalar_prefetch = 0 : i64, scratch_operands = 0 : i64, tpu.core_type = #tpu.core_type<tc>, window_params = [{transform_indices = @transform_0, window_bounds = array<i64: 32, 128>}, {pipeline_mode = #tpu.pipeline_mode<synchronous>, transform_indices = @transform_1, window_bounds = array<i64: 64, 32>}, {pipeline_mode = #tpu.pipeline_mode<synchronous>, transform_indices = @transform_2, window_bounds = array<i64: 64, 1>}, {pipeline_mode = #tpu.pipeline_mode<synchronous>, transform_indices = @transform_3, window_bounds = array<i64: 2, 64>}, {pipeline_mode = #tpu.pipeline_mode<synchronous>, transform_indices = @transform_4, window_bounds = array<i64: 2, 1>}, {transform_indices = @transform_5, window_bounds = array<i64: 2, 128>}]} {
    %c0 = arith.constant 0 : index
    %c0_0 = arith.constant 0 : index
    %0 = vector.load %arg2[%c0, %c0_0] : memref<64x32xf32, #tpu.memory_space<vmem>>, vector<64x32xf32>
    %c0_1 = arith.constant 0 : index
    %c0_2 = arith.constant 0 : index
    %1 = vector.load %arg1[%c0_1, %c0_2] : memref<32x128xf32, #tpu.memory_space<vmem>>, vector<32x128xf32>
    %cst = arith.constant dense<0.000000e+00> : vector<64x128xf32>
    %2 = tpu.matmul %0, %1, %cst {dimension_numbers = #tpu.dot_dimension_numbers<[1], [0], [0], [1], [0, 0, 1, 1], [], []>} : vector<64x32xf32>, vector<32x128xf32>, vector<64x128xf32> -> vector<64x128xf32>
    %c0_3 = arith.constant 0 : index
    %c0_4 = arith.constant 0 : index
    %3 = vector.load %arg3[%c0_3, %c0_4] : memref<64x1xf32, #tpu.memory_space<vmem>>, vector<64x1xf32>
    %4 = vector.broadcast %3 : vector<64x1xf32> to vector<64x128xf32>
    %5 = arith.addf %2, %4 : vector<64x128xf32>
    %cst_5 = arith.constant 0.000000e+00 : f32
    %6 = vector.broadcast %cst_5 : f32 to vector<64x128xf32>
    %7 = arith.maximumf %5, %6 : vector<64x128xf32>
    %c0_6 = arith.constant 0 : index
    %c0_7 = arith.constant 0 : index
    %8 = vector.load %arg4[%c0_6, %c0_7] : memref<2x64xf32, #tpu.memory_space<vmem>>, vector<2x64xf32>
    %cst_8 = arith.constant dense<0.000000e+00> : vector<2x128xf32>
    %9 = tpu.matmul %8, %7, %cst_8 {dimension_numbers = #tpu.dot_dimension_numbers<[1], [0], [0], [1], [0, 0, 1, 1], [], []>} : vector<2x64xf32>, vector<64x128xf32>, vector<2x128xf32> -> vector<2x128xf32>
    %c0_9 = arith.constant 0 : index
    %c0_10 = arith.constant 0 : index
    %10 = vector.load %arg5[%c0_9, %c0_10] : memref<2x1xf32, #tpu.memory_space<vmem>>, vector<2x1xf32>
    %11 = vector.broadcast %10 : vector<2x1xf32> to vector<2x128xf32>
    %12 = arith.addf %9, %11 : vector<2x128xf32>
    %13 = tpu.iota {dimensions = array<i32: 0>} : vector<2x128xi32>
    %c0_i32 = arith.constant 0 : i32
    %14 = vector.broadcast %c0_i32 : i32 to vector<2x128xi32>
    %15 = arith.cmpi eq, %13, %14 : vector<2x128xi32>
    %cst_11 = arith.constant 0.000000e+00 : f32
    %16 = vector.broadcast %cst_11 : f32 to vector<2x128xf32>
    %17 = arith.maximumf %12, %16 : vector<2x128xf32>
    %18 = vector.broadcast %cst_11 : f32 to vector<2x128xf32>
    %19 = arith.subf %12, %18 : vector<2x128xf32>
    %20 = arith.cmpf one, %19, %19 : vector<2x128xf32>
    %21 = vector.broadcast %cst_11 : f32 to vector<2x128xf32>
    %22 = arith.addf %12, %21 : vector<2x128xf32>
    %23 = math.absf %19 : vector<2x128xf32>
    %cst_12 = arith.constant 0.000000e+00 : f32
    %24 = vector.broadcast %cst_12 : f32 to vector<2x128xf32>
    %25 = arith.subf %24, %23 : vector<2x128xf32>
    %26 = math.exp %25 : vector<2x128xf32>
    %27 = math.log1p %26 : vector<2x128xf32>
    %28 = arith.addf %17, %27 : vector<2x128xf32>
    %29 = arith.select %20, %22, %28 : vector<2x128xi1>, vector<2x128xf32>
    %30 = arith.select %15, %12, %29 : vector<2x128xi1>, vector<2x128xf32>
    %c0_13 = arith.constant 0 : index
    %c0_14 = arith.constant 0 : index
    %31 = vector.load %arg6[%c0_13, %c0_14] : memref<2x128xf32, #tpu.memory_space<vmem>>, vector<2x128xf32>
    tpu.vector_store %arg6[%c0_13, %c0_14], %30 {strides = array<i32>} : memref<2x128xf32, #tpu.memory_space<vmem>>, vector<2x128xf32>,
    return
  }
  func.func @transform_0(%arg0: i32) -> (i32, i32) {
    %c0_i32 = arith.constant 0 : i32
    %c0_i32_0 = arith.constant 0 : i32
    return %c0_i32, %arg0 : i32, i32
  }
  func.func @transform_1(%arg0: i32) -> (i32, i32) {
    %c0_i32 = arith.constant 0 : i32
    %c0_i32_0 = arith.constant 0 : i32
    %c0_i32_1 = arith.constant 0 : i32
    return %c0_i32, %c0_i32_0 : i32, i32
  }
  func.func @transform_2(%arg0: i32) -> (i32, i32) {
    %c0_i32 = arith.constant 0 : i32
    %c0_i32_0 = arith.constant 0 : i32
    %c0_i32_1 = arith.constant 0 : i32
    return %c0_i32, %c0_i32_0 : i32, i32
  }
  func.func @transform_3(%arg0: i32) -> (i32, i32) {
    %c0_i32 = arith.constant 0 : i32
    %c0_i32_0 = arith.constant 0 : i32
    %c0_i32_1 = arith.constant 0 : i32
    return %c0_i32, %c0_i32_0 : i32, i32
  }
  func.func @transform_4(%arg0: i32) -> (i32, i32) {
    %c0_i32 = arith.constant 0 : i32
    %c0_i32_0 = arith.constant 0 : i32
    %c0_i32_1 = arith.constant 0 : i32
    return %c0_i32, %c0_i32_0 : i32, i32
  }
  func.func @transform_5(%arg0: i32) -> (i32, i32) {
    %c0_i32 = arith.constant 0 : i32
    %c0_i32_0 = arith.constant 0 : i32
    return %c0_i32, %arg0 : i32, i32
  }
}

</mosaic_0001>

<llo_original>
// kernel: mbr_get_scores_and_best.1
$region0: #{mbr_get_scores_and_best.1}
  #allocation0 [shape = 'u32[]', space=smem, size = 0x4, offset = 0x4, fixed_abs, tag = 'smem constant byte address 0x4 - core index']
  #allocation1 [shape = 'u32[144,128]{1,0:T(1,128)}', space=vmem, size = 0x12000, scoped, tag = 'internal scratch']
  %s0 = inlined_call_operand.vmem [shape: f32[32,128], index: 0, kind: input, shape index: {}]
  %s1 = inlined_call_operand.vmem [shape: f32[64,32], index: 1, kind: input, shape index: {}]
  %s2 = inlined_call_operand.vmem [shape: f32[64,1], index: 2, kind: input, shape index: {}]
  %s3 = inlined_call_operand.vmem [shape: f32[2,64], index: 3, kind: input, shape index: {}]
  %s4 = inlined_call_operand.vmem [shape: f32[2,1], index: 4, kind: input, shape index: {}]
  %s5 = inlined_call_operand.vmem [shape: f32[2,128], index: 5, kind: output, shape index: {}]
  %s6 = sld [smem:[#allocation0]]
  $region30: #{mbr_get_scores_and_best.1} parent=0
    _
  %s8 = ssub.s32 1, %s6
  %s9 = scalar_select 0, %s8, %s6
  // Predicated region
  $region2: #{mbr_get_scores_and_best.1} parent=0 // pred_check
    _
  $region3: #{mbr_get_scores_and_best.1} parent=0 // pred_check_branch
    %11 = sbr.rel (0) target = $region5
  $region4: #{mbr_get_scores_and_best.1} parent=0 // pred_region
    _
  $region5: #{mbr_get_scores_and_best.1} parent=0 // pred_fallthru
    _
  // Predicated region
  $region6: #{mbr_get_scores_and_best.1} parent=0 // pred_check
    _
  $region7: #{mbr_get_scores_and_best.1} parent=0 // pred_check_branch
    %13 = sbr.rel (0) target = $region9
  $region8: #{mbr_get_scores_and_best.1} parent=0 // pred_region
    _
  $region9: #{mbr_get_scores_and_best.1} parent=0 // pred_fallthru
    _
  // Predicated region
  $region10: #{mbr_get_scores_and_best.1} parent=0 // pred_check
    _
  $region11: #{mbr_get_scores_and_best.1} parent=0 // pred_check_branch
    %15 = sbr.rel (0) target = $region13
  $region12: #{mbr_get_scores_and_best.1} parent=0 // pred_region
    _
  $region13: #{mbr_get_scores_and_best.1} parent=0 // pred_fallthru
    _
  // Predicated region
  $region14: #{mbr_get_scores_and_best.1} parent=0 // pred_check
    _
  $region15: #{mbr_get_scores_and_best.1} parent=0 // pred_check_branch
    %17 = sbr.rel (0) target = $region17
  $region16: #{mbr_get_scores_and_best.1} parent=0 // pred_region
    _
  $region17: #{mbr_get_scores_and_best.1} parent=0 // pred_fallthru
    _
  // Predicated region
  $region18: #{mbr_get_scores_and_best.1} parent=0 // pred_check
    _
  $region19: #{mbr_get_scores_and_best.1} parent=0 // pred_check_branch
    %19 = sbr.rel (0) target = $region21
  $region20: #{mbr_get_scores_and_best.1} parent=0 // pred_region
    _
  $region21: #{mbr_get_scores_and_best.1} parent=0 // pred_fallthru
    _
  %v20 = vld [vmem:[%s1] sm:$0xff]
  %v21 = vld [vmem:[%s1 + $0x8] sm:$0xff]
  %v22 = vld [vmem:[%s1 + $0x10] sm:$0xff]
  %v23 = vld [vmem:[%s1 + $0x18] sm:$0xff]
  %v24 = vld [vmem:[%s1 + $0x20] sm:$0xff]
  %v25 = vld [vmem:[%s1 + $0x28] sm:$0xff]
  %v26 = vld [vmem:[%s1 + $0x30] sm:$0xff]
  %v27 = vld [vmem:[%s1 + $0x38] sm:$0xff]
  %v28 = vld [vmem:[%s0] sm:$0xff]
  %v29 = vld [vmem:[%s0 + $0x8] sm:$0xff]
  %v30 = vld [vmem:[%s0 + $0x10] sm:$0xff]
  %v31 = vld [vmem:[%s0 + $0x18] sm:$0xff]
  %v32 = vld [vmem:[%s2] sm:$0xff]
  %v33 = vld [vmem:[%s2 + $0x8] sm:$0xff]
  %v34 = vld [vmem:[%s2 + $0x10] sm:$0xff]
  %v35 = vld [vmem:[%s2 + $0x18] sm:$0xff]
  %v36 = vld [vmem:[%s2 + $0x20] sm:$0xff]
  %v37 = vld [vmem:[%s2 + $0x28] sm:$0xff]
  %v38 = vld [vmem:[%s2 + $0x30] sm:$0xff]
  %v39 = vld [vmem:[%s2 + $0x38] sm:$0xff]
  %41 = vset.pattern.permute.xlu0 0
  %42 = vperm.xlu0 %41, %v32
  %v43 = vpop.permute.xlu0 %42
  %46 = vset.pattern.permute.xlu0 0
  %47 = vperm.xlu0 %46, %v33
  %v48 = vpop.permute.xlu0 %47
  %51 = vset.pattern.permute.xlu0 0
  %52 = vperm.xlu0 %51, %v34
  %v53 = vpop.permute.xlu0 %52
  %56 = vset.pattern.permute.xlu0 0
  %57 = vperm.xlu0 %56, %v35
  %v58 = vpop.permute.xlu0 %57
  %61 = vset.pattern.permute.xlu0 0
  %62 = vperm.xlu0 %61, %v36
  %v63 = vpop.permute.xlu0 %62
  %66 = vset.pattern.permute.xlu0 0
  %67 = vperm.xlu0 %66, %v37
  %v68 = vpop.permute.xlu0 %67
  %71 = vset.pattern.permute.xlu0 0
  %72 = vperm.xlu0 %71, %v38
  %v73 = vpop.permute.xlu0 %72
  %76 = vset.pattern.permute.xlu0 0
  %77 = vperm.xlu0 %76, %v39
  %v78 = vpop.permute.xlu0 %77
  %vm80 = vcmask 261120
  %v82 = vsel %vm80, %v20, 0
  %v85 = vsel %vm80, %v21, 0
  %v88 = vsel %vm80, %v22, 0
  %v91 = vsel %vm80, %v23, 0
  %v94 = vsel %vm80, %v24, 0
  %v97 = vsel %vm80, %v25, 0
  %v100 = vsel %vm80, %v26, 0
  %v103 = vsel %vm80, %v27, 0
  %105 = vmatprep.subr.mxu0 0.0
  %106 = vmatpush1.msra.mxu0 0.0
  %107 = vmatprep.subr.mxu0 0.0
  %108 = vmatpush1.msra.mxu0 0.0
  %109 = vmatprep.subr.mxu0 0.0
  %110 = vmatpush1.msra.mxu0 0.0
  %111 = vmatprep.subr.mxu0 0.0
  %112 = vmatpush1.msra.mxu0 0.0
  %113 = vmatprep.subr.mxu0 0.0
  %114 = vmatpush1.msra.mxu0 0.0
  %115 = vmatprep.subr.mxu0 0.0
  %116 = vmatpush1.msra.mxu0 0.0
  %117 = vmatprep.subr.mxu0 0.0
  %118 = vmatpush1.msra.mxu0 0.0
  %119 = vmatprep.subr.mxu0 0.0
  %120 = vmatpush1.msra.mxu0 0.0
  %121 = vmatprep.subr.mxu0 0.0
  %122 = vmatpush1.msra.mxu0 0.0
  %123 = vmatprep.subr.mxu0 0.0
  %124 = vmatpush1.msra.mxu0 0.0
  %125 = vmatprep.subr.mxu0 0.0
  %126 = vmatpush1.msra.mxu0 0.0
  %127 = vmatprep.subr.mxu0 0.0
  %128 = vmatpush1.msra.mxu0 0.0
  %129 = vmatprep.subr.mxu0 0.0
  %130 = vmatpush1.msra.mxu0 %v31
  %131 = vmatprep.subr.mxu0 0.0
  %132 = vmatpush1.msra.mxu0 %v30
  %133 = vmatprep.subr.mxu0 0.0
  %134 = vmatpush1.msra.mxu0 %v29
  %135 = vmatprep.subr.mxu0 0.0
  %136 = vmatpush1.msra.mxu0 %v28
  %137 = vmatprep.subr.mxu0 0.0
  %138 = vmatpush2.msra.mxu0 0.0
  %139 = vmatprep.subr.mxu0 0.0
  %140 = vmatpush2.msra.mxu0 0.0
  %141 = vmatprep.subr.mxu0 0.0
  %142 = vmatpush2.msra.mxu0 0.0
  %143 = vmatprep.subr.mxu0 0.0
  %144 = vmatpush2.msra.mxu0 0.0
  %145 = vmatprep.subr.mxu0 0.0
  %146 = vmatpush2.msra.mxu0 0.0
  %147 = vmatprep.subr.mxu0 0.0
  %148 = vmatpush2.msra.mxu0 0.0
  %149 = vmatprep.subr.mxu0 0.0
  %150 = vmatpush2.msra.mxu0 0.0
  %151 = vmatprep.subr.mxu0 0.0
  %152 = vmatpush2.msra.mxu0 0.0
  %153 = vmatprep.subr.mxu0 0.0
  %154 = vmatpush2.msra.mxu0 0.0
  %155 = vmatprep.subr.mxu0 0.0
  %156 = vmatpush2.msra.mxu0 0.0
  %157 = vmatprep.subr.mxu0 0.0
  %158 = vmatpush2.msra.mxu0 0.0
  %159 = vmatprep.subr.mxu0 0.0
  %160 = vmatpush2.msra.mxu0 0.0
  %161 = vmatprep.subr.mxu0 0.0
  %162 = vmatpush2.msra.mxu0 0.0
  %163 = vmatprep.subr.mxu0 0.0
  %164 = vmatpush2.msra.mxu0 0.0
  %165 = vmatprep.subr.mxu0 0.0
  %166 = vmatpush2.msra.mxu0 0.0
  %167 = vmatprep.subr.mxu0 0.0
  %168 = vmatpush2.msra.mxu0 0.0
  %169 = vmatprep.mubr.f32.mxu0 0.0
  %170 = vmatmul.mubr.f32.gmra.mxu0 %v82
  %v171 = vpop.f32.mrf.mxu0
  %v172 = vadd.f32 %v43, %v171
  %v173 = vpop.f32.mrf.mxu0
  %174 = vmatprep.mubr.f32.mxu0 0.0
  %175 = vmatmul.mubr.f32.gmra.mxu0 %v85
  %v176 = vpop.f32.mrf.mxu0
  %v177 = vadd.f32 %v48, %v176
  %v178 = vpop.f32.mrf.mxu0
  %179 = vmatprep.mubr.f32.mxu0 0.0
  %180 = vmatmul.mubr.f32.gmra.mxu0 %v88
  %v181 = vpop.f32.mrf.mxu0
  %v182 = vadd.f32 %v53, %v181
  %v183 = vpop.f32.mrf.mxu0
  %184 = vmatprep.mubr.f32.mxu0 0.0
  %185 = vmatmul.mubr.f32.gmra.mxu0 %v91
  %v186 = vpop.f32.mrf.mxu0
  %v187 = vadd.f32 %v58, %v186
  %v188 = vpop.f32.mrf.mxu0
  %189 = vmatprep.mubr.f32.mxu0 0.0
  %190 = vmatmul.mubr.f32.gmra.mxu0 %v94
  %v191 = vpop.f32.mrf.mxu0
  %v192 = vadd.f32 %v63, %v191
  %v193 = vpop.f32.mrf.mxu0
  %194 = vmatprep.mubr.f32.mxu0 0.0
  %195 = vmatmul.mubr.f32.gmra.mxu0 %v97
  %v196 = vpop.f32.mrf.mxu0
  %v197 = vadd.f32 %v68, %v196
  %v198 = vpop.f32.mrf.mxu0
  %199 = vmatprep.mubr.f32.mxu0 0.0
  %200 = vmatmul.mubr.f32.gmra.mxu0 %v100
  %v201 = vpop.f32.mrf.mxu0
  %v202 = vadd.f32 %v73, %v201
  %v203 = vpop.f32.mrf.mxu0
  %204 = vmatprep.mubr.f32.mxu0 0.0
  %205 = vmatmul.mubr.f32.gmra.mxu0 %v103
  %v206 = vpop.f32.mrf.mxu0
  %v207 = vadd.f32 %v78, %v206
  %v208 = vpop.f32.mrf.mxu0
  %209 = vdwg.mxu0
  %v210 = vmax.f32 %v172, 0.0
  %v211 = vmax.f32 %v177, 0.0
  %v212 = vmax.f32 %v182, 0.0
  %v213 = vmax.f32 %v187, 0.0
  %v214 = vmax.f32 %v192, 0.0
  %v215 = vmax.f32 %v197, 0.0
  %v216 = vmax.f32 %v202, 0.0
  %v217 = vmax.f32 %v207, 0.0
  %v218 = vld [vmem:[%s3] sm:$0x3]
  %v219 = vld [vmem:[%s4] sm:$0x3]
  %221 = vset.pattern.permute.xlu0 0
  %222 = vperm.xlu0 %221, %v219
  %v223 = vpop.permute.xlu0 %222
  %vm225 = vcmask 523264
  %v227 = vsel %vm225, %v218, 0
  %229 = vmatprep.subr.mxu0 0.0
  %230 = vmatpush1.msra.mxu0 0.0
  %231 = vmatprep.subr.mxu0 0.0
  %232 = vmatpush1.msra.mxu0 0.0
  %233 = vmatprep.subr.mxu0 0.0
  %234 = vmatpush1.msra.mxu0 0.0
  %235 = vmatprep.subr.mxu0 0.0
  %236 = vmatpush1.msra.mxu0 0.0
  %237 = vmatprep.subr.mxu0 0.0
  %238 = vmatpush1.msra.mxu0 0.0
  %239 = vmatprep.subr.mxu0 0.0
  %240 = vmatpush1.msra.mxu0 0.0
  %241 = vmatprep.subr.mxu0 0.0
  %242 = vmatpush1.msra.mxu0 0.0
  %243 = vmatprep.subr.mxu0 0.0
  %244 = vmatpush1.msra.mxu0 0.0
  %245 = vmatprep.subr.mxu0 0.0
  %246 = vmatpush1.msra.mxu0 %v217
  %247 = vmatprep.subr.mxu0 0.0
  %248 = vmatpush1.msra.mxu0 %v216
  %249 = vmatprep.subr.mxu0 0.0
  %250 = vmatpush1.msra.mxu0 %v215
  %251 = vmatprep.subr.mxu0 0.0
  %252 = vmatpush1.msra.mxu0 %v214
  %253 = vmatprep.subr.mxu0 0.0
  %254 = vmatpush1.msra.mxu0 %v213
  %255 = vmatprep.subr.mxu0 0.0
  %256 = vmatpush1.msra.mxu0 %v212
  %257 = vmatprep.subr.mxu0 0.0
  %258 = vmatpush1.msra.mxu0 %v211
  %259 = vmatprep.subr.mxu0 0.0
  %260 = vmatpush1.msra.mxu0 %v210
  %261 = vmatprep.subr.mxu0 0.0
  %262 = vmatpush2.msra.mxu0 0.0
  %263 = vmatprep.subr.mxu0 0.0
  %264 = vmatpush2.msra.mxu0 0.0
  %265 = vmatprep.subr.mxu0 0.0
  %266 = vmatpush2.msra.mxu0 0.0
  %267 = vmatprep.subr.mxu0 0.0
  %268 = vmatpush2.msra.mxu0 0.0
  %269 = vmatprep.subr.mxu0 0.0
  %270 = vmatpush2.msra.mxu0 0.0
  %271 = vmatprep.subr.mxu0 0.0
  %272 = vmatpush2.msra.mxu0 0.0
  %273 = vmatprep.subr.mxu0 0.0
  %274 = vmatpush2.msra.mxu0 0.0
  %275 = vmatprep.subr.mxu0 0.0
  %276 = vmatpush2.msra.mxu0 0.0
  %277 = vmatprep.subr.mxu0 0.0
  %278 = vmatpush2.msra.mxu0 0.0
  %279 = vmatprep.subr.mxu0 0.0
  %280 = vmatpush2.msra.mxu0 0.0
  %281 = vmatprep.subr.mxu0 0.0
  %282 = vmatpush2.msra.mxu0 0.0
  %283 = vmatprep.subr.mxu0 0.0
  %284 = vmatpush2.msra.mxu0 0.0
  %285 = vmatprep.subr.mxu0 0.0
  %286 = vmatpush2.msra.mxu0 0.0
  %287 = vmatprep.subr.mxu0 0.0
  %288 = vmatpush2.msra.mxu0 0.0
  %289 = vmatprep.subr.mxu0 0.0
  %290 = vmatpush2.msra.mxu0 0.0
  %291 = vmatprep.subr.mxu0 0.0
  %292 = vmatpush2.msra.mxu0 0.0
  %293 = vmatprep.mubr.f32.mxu0 0.0
  %294 = vmatmul.mubr.f32.gmra.mxu0 %v227
  %v295 = vpop.f32.mrf.mxu0
  %v296 = vadd.f32 %v223, %v295
  %v297 = vpop.f32.mrf.mxu0
  %298 = vdwg.mxu0
  %v299 = vlaneseq
  %v300 = vshrl.u32 %v299, 7
  %vm301 = vcmp.eq.s32.totalorder %v300, 0
  %v302 = vmax.f32 %v296, 0.0
  %vm303 = vcmp.ne.f32.partialorder %v296, %v296
  %v304 = vadd.f32 %v296, 0.0
  %v305 = vand.u32 2147483647, %v296
  %v306 = vsub.f32 0.0, %v305
  %v307 = vmul.f32 %v306, 1.442695
  %v308 = vpow.pop %v307
  %v309 = vadd.f32 %v308, 1.0
  %v310 = vlog2.pop %v309
  %v311 = vmul.f32 %v310, 0.6931472
  %v312 = vmul.f32 -0.5, %v308
  %v313 = vadd.f32 %v312, 1.0
  %v314 = vmul.f32 %v313, %v308
  %v315 = vand.u32 2147483647, %v308
  %vm316 = vcmp.lt.f32.partialorder %v315, 0.0004427343
  %v317 = vsel %vm316, %v314, %v311
  %v318 = vadd.f32 %v302, %v317
  %v319 = vsel %vm303, %v304, %v318
  %v320 = vsel %vm301, %v296, %v319
  %321 = vst [vmem:[%s5] sm:$0x3] %v320
  // Predicated region
  $region22: #{mbr_get_scores_and_best.1} parent=0 // pred_check
    _
  $region23: #{mbr_get_scores_and_best.1} parent=0 // pred_check_branch
    %323 = sbr.rel (0) target = $region25
  $region24: #{mbr_get_scores_and_best.1} parent=0 // pred_region
    _
  $region25: #{mbr_get_scores_and_best.1} parent=0 // pred_fallthru
    _
  // Predicated region
  $region26: #{mbr_get_scores_and_best.1} parent=0 // pred_check
    _
  $region27: #{mbr_get_scores_and_best.1} parent=0 // pred_check_branch
    %325 = sbr.rel (0) target = $region29
  $region28: #{mbr_get_scores_and_best.1} parent=0 // pred_region
    _
  $region29: #{mbr_get_scores_and_best.1} parent=0 // pred_fallthru
    _

</llo_original>
